<compile_context>
chip_gen: v7x
topology: tpu7x:2x2x1
jax: 0.10.0
libtpu: 0.0.40
codegen_flags: <defaults>
</compile_context>

<pallas_src>
import functools

import jax
import jax.numpy as jnp
from jax.experimental import pallas as pl
from jax.experimental.pallas import tpu as pltpu

_LANE = 128


# -----------------------------------------------------------------------------
# padding / tile helpers
# -----------------------------------------------------------------------------
def _round_up(x, m):
    return (x + m - 1) // m * m


def _pad_to(x, shape):
    pads = [(0, t - s) for s, t in zip(x.shape, shape)]
    if not any(p[1] for p in pads):
        return x
    return jnp.pad(x, pads)


@functools.lru_cache(maxsize=None)
def _vmem_limit():
    """Per-generation scoped-VMEM budget: ~3/4 of physical, clamped to 32..96 MiB
    (v5e/v6e: 96 MiB of the 128 MiB; v7x: 48 MiB of its 64 MiB)."""
    try:
        cap = int(pltpu.get_tpu_info().vmem_capacity_bytes)
    except Exception:
        cap = 0
    if cap <= 0:
        return 48 * 1024 * 1024          # safe fallback on every generation
    return max(32 * 1024 * 1024, min(cap * 3 // 4, 96 * 1024 * 1024))


def _pick_lane_tile(dim, pref):
    """Largest multiple of 128 <= pref that divides `dim` (dim is a 128-multiple)."""
    t = max(min(pref, dim) // _LANE * _LANE, _LANE)
    while dim % t:
        t -= _LANE
    return t


def _pick_row_tile(m, pref=256):
    """(tile, padded_rows) for the flattened B*S row axis.
    Prefers 256-row tiles (256x256 MXU on v6e/v7x, fewer w_lm re-streams) but
    keeps >=2 row tiles whenever possible so the "parallel" i-axis can feed
    v7x's second TensorCore."""
    if m >= 2 * pref:
        return pref, _round_up(m, pref)
    if m >= 2 * _LANE:
        return _LANE, _round_up(m, _LANE)
    t = _round_up(max(m, 1), 16)         # 16 keeps bf16 sublane packing clean
    return t, t


def _pick_seq_tile(Sp, row_bytes, pref=128, budget=4 * 1024 * 1024):
    """Seq tile (multiple of 16) whose (B, ts, Hp) block stays under `budget`."""
    cap = max(budget // max(row_bytes, 1), 16)
    t = min(pref, Sp, cap)
    t = max(t // 16 * 16, 16)
    while Sp % t:
        t -= 16
    return t


# -----------------------------------------------------------------------------
# Fused [tanh-MLP -> LM head (+ online-softmax CE)] kernel
#   grid = (row tiles i, vocab tiles j, LM-head contraction tiles k over H)
#   hidden chunk k computed once per row tile (j == 0) from a streamed
#   (Ep, tk) w_hidden block, stashed in VMEM scratch, reused for all j.
# -----------------------------------------------------------------------------
def _fused_lm_kernel(*refs, emit_hidden, compute_ce, num_k, tk, tn, true_vocab):
    it = iter(refs)
    emb_ref = next(it)
    wh_ref = next(it)
    bh_ref = next(it)
    wl_ref = next(it)
    bl_ref = next(it)
    lab_ref = next(it) if compute_ce else None
    logits_ref = next(it)
    hid_out_ref = next(it) if emit_hidden else None
    nll_ref = next(it) if compute_ce else None
    hid_scr = next(it)
    acc_ref = next(it)
    if compute_ce:
        m_scr = next(it)
        l_scr = next(it)
        lbl_scr = next(it)

    j = pl.program_id(1)                       # vocab tile
    k = pl.program_id(2)                       # LM-head contraction tile (over H)
    last_j = pl.num_programs(1) - 1
    last_k = pl.num_programs(2) - 1

    # Hidden chunk k: computed once per row tile (first vocab tile only) from a
    # streamed w_hidden chunk; never re-computed / re-fetched while j iterates.
    # NOTE: relies on j, k staying sequential ("arbitrary") on one core.
    @pl.when(j == 0)
    def _():
        h = jnp.tanh(
            jnp.dot(emb_ref[...], wh_ref[...], preferred_element_type=jnp.float32)
            + bh_ref[...])                                   # f32 elementwise (v5e-friendly)
        hid_scr[k] = h.astype(hid_scr.dtype)

    if emit_hidden:
        # Flush all hidden chunks to the resident (tm, Hp) bf16 output block
        # with static lane slices once the last chunk is ready.
        @pl.when((j == 0) & (k == last_k))
        def _():
            for kk in range(num_k):
                hid_out_ref[:, kk * tk:(kk + 1) * tk] = hid_scr[kk]

    if compute_ce:
        @pl.when((j == 0) & (k == 0))
        def _():
            m_scr[...] = jnp.full_like(m_scr, -1e30)
            l_scr[...] = jnp.zeros_like(l_scr)
            lbl_scr[...] = jnp.zeros_like(lbl_scr)

    @pl.when(k == 0)
    def _():
        acc_ref[...] = jnp.zeros_like(acc_ref)

    acc_ref[...] += jnp.dot(hid_scr[k], wl_ref[...],
                            preferred_element_type=jnp.float32)

    @pl.when(k == last_k)
    def _():
        logits = acc_ref[...] + bl_ref[...]     # bias added once, on final K step
        logits_ref[...] = logits.astype(logits_ref.dtype)
        if compute_ce:
            # Online softmax over the vocab tiles (padded vocab columns masked).
            col = jax.lax.broadcasted_iota(jnp.int32, logits.shape, 1) + j * tn
            masked = jnp.where(col < true_vocab, logits, -1e30)
            m_new = jnp.maximum(m_scr[...], jnp.max(masked, axis=-1, keepdims=True))
            l_scr[...] = (l_scr[...] * jnp.exp(m_scr[...] - m_new)
                          + jnp.sum(jnp.exp(masked - m_new), axis=-1, keepdims=True))
            m_scr[...] = m_new
            hit = col == lab_ref[...]
            lbl_scr[...] += jnp.sum(jnp.where(hit, logits, 0.0),
                                    axis=-1, keepdims=True)

    if compute_ce:
        @pl.when((j == last_j) & (k == last_k))
        def _():
            # per-token NLL = logsumexp(logits) - logit[label]
            nll_ref[...] = m_scr[...] + jnp.log(l_scr[...]) - lbl_scr[...]


def fused_lm_forward(emb2d, w_hidden, b_hidden, w_lm, b_lm, labels2d, *,
                     emit_hidden, true_vocab):
    """emb2d: (Mp, Ep) bf16 padded.  Returns (logits (Mp,Vp) f32,
    hidden (Mp,Hp) bf16 | None, nll (Mp,1) f32 | None)."""
    Mp, Ep = emb2d.shape
    Hp = w_hidden.shape[1]
    Vp = w_lm.shape[1]
    compute_ce = labels2d is not None

    tm, _ = _pick_row_tile(Mp)
    tn = _pick_lane_tile(Vp, 512)       # bigger vocab tiles -> fewer grid steps
    tk = _pick_lane_tile(Hp, 1024)      # bigger K tiles -> >= 1 MiB w_lm DMA blocks
    num_k = Hp // tk
    grid = (Mp // tm, Vp // tn, num_k)

    # w_hidden / b_hidden chunk index: stream chunks 0..num_k-1 while j == 0,
    # then clamp to the last chunk so NO re-fetch happens while j > 0 (the
    # kernel only reads them at j == 0) -> exactly one w_hidden pass per row tile.
    def wh_index(i, j, k):
        return (0, jnp.minimum(k + j * num_k, num_k - 1))

    in_specs = [
        pl.BlockSpec((tm, Ep), lambda i, j, k: (i, 0)),   # row tile, resident across j,k
        pl.BlockSpec((Ep, tk), wh_index),                 # streamed MLP weights (chunked)
        pl.BlockSpec((1, tk), wh_index),                  # matching MLP bias chunk
        pl.BlockSpec((tk, tn), lambda i, j, k: (k, j)),   # streamed LM-head weights
        pl.BlockSpec((1, tn), lambda i, j, k: (0, j)),    # per-vocab-tile bias
    ]
    inputs = [emb2d, w_hidden, b_hidden, w_lm, b_lm]
    if compute_ce:
        in_specs.append(pl.BlockSpec((tm, 1), lambda i, j, k: (i, 0)))  # shifted labels
        inputs.append(labels2d)

    out_shape = [jax.ShapeDtypeStruct((Mp, Vp), jnp.float32)]
    out_specs = [pl.BlockSpec((tm, tn), lambda i, j, k: (i, j))]
    if emit_hidden:
        out_shape.append(jax.ShapeDtypeStruct((Mp, Hp), jnp.bfloat16))   # bf16 writeback
        out_specs.append(pl.BlockSpec((tm, Hp), lambda i, j, k: (i, 0)))
    if compute_ce:
        out_shape.append(jax.ShapeDtypeStruct((Mp, 1), jnp.float32))     # per-token NLL
        out_specs.append(pl.BlockSpec((tm, 1), lambda i, j, k: (i, 0)))

    scratch_shapes = [
        pltpu.VMEM((num_k, tm, tk), jnp.bfloat16),   # hidden chunks, reused across j
        pltpu.VMEM((tm, tn), jnp.float32),           # LM-head accumulator
    ]
    if compute_ce:
        scratch_shapes += [pltpu.VMEM((tm, 1), jnp.float32)] * 3   # m, l, label-logit

    kernel = functools.partial(
        _fused_lm_kernel, emit_hidden=emit_hidden, compute_ce=compute_ce,
        num_k=num_k, tk=tk, tn=tn, true_vocab=true_vocab)

    outs = pl.pallas_call(
        kernel,
        out_shape=tuple(out_shape),
        grid=grid,
        in_specs=in_specs,
        out_specs=tuple(out_specs),
        scratch_shapes=scratch_shapes,
        compiler_params=pltpu.CompilerParams(
            # rows independent -> megacore-shardable (v7x); vocab & contraction
            # axes must stay sequential (scratch reuse / accumulators).
            dimension_semantics=("parallel", "arbitrary", "arbitrary"),
            vmem_limit_bytes=_vmem_limit(),
        ),
    )(*inputs)

    outs = list(outs)
    logits_p = outs.pop(0)
    hidden_p = outs.pop(0) if emit_hidden else None
    nll_p = outs.pop(0) if compute_ce else None
    return logits_p, hidden_p, nll_p


# -----------------------------------------------------------------------------
# Single-K-step linear kernel (classifier on the pooled last token — tiny)
# -----------------------------------------------------------------------------
def _linear_kernel(x_ref, w_ref, b_ref, o_ref):
    o_ref[...] = (
        jnp.dot(x_ref[...], w_ref[...], preferred_element_type=jnp.float32)
        + b_ref[...]).astype(o_ref.dtype)


def linear_pallas(x, w, b):
    """x: (Bp, Kp) bf16, w: (Kp, Np) bf16, b: (1, Np) f32 -> (Bp, Np) f32."""
    Bp, Kp = x.shape
    Np = w.shape[1]
    tn = _pick_lane_tile(Np, 512)
    return pl.pallas_call(
        _linear_kernel,
        out_shape=jax.ShapeDtypeStruct((Bp, Np), jnp.float32),
        grid=(Np // tn,),
        in_specs=[
            pl.BlockSpec((Bp, Kp), lambda j: (0, 0)),
            pl.BlockSpec((Kp, tn), lambda j: (0, j)),
            pl.BlockSpec((1, tn), lambda j: (0, j)),
        ],
        out_specs=pl.BlockSpec((Bp, tn), lambda j: (0, j)),
        compiler_params=pltpu.CompilerParams(
            dimension_semantics=("parallel",),
            vmem_limit_bytes=_vmem_limit(),
        ),
    )(x, w, b)


# -----------------------------------------------------------------------------
# Seq-tiled mean-pooling + classifier kernel (bf16 input, f32 sum accumulator)
# -----------------------------------------------------------------------------
def _mean_clf_kernel(h_ref, w_ref, b_ref, o_ref, sum_ref, *, inv_seq_len):
    s = pl.program_id(0)

    @pl.when(s == 0)
    def _():
        sum_ref[...] = jnp.zeros_like(sum_ref)

    # seq reduction lands on the XLU slot -> effectively free next to the matmul
    sum_ref[...] += jnp.sum(h_ref[...].astype(jnp.float32), axis=1)

    @pl.when(s == pl.num_programs(0) - 1)
    def _():
        pooled = (sum_ref[...] * inv_seq_len).astype(w_ref.dtype)   # true-S mean
        o_ref[...] = (
            jnp.dot(pooled, w_ref[...], preferred_element_type=jnp.float32)
            + b_ref[...]).astype(o_ref.dtype)


def mean_pool_classifier_pallas(hidden, w, b, *, seq_len):
    """hidden: (B, S, Hp) bf16 (H-padding is zero) -> (B, Cp) f32."""
    B, S, Hp = hidden.shape
    Cp = w.shape[1]
    budget = 4 * 1024 * 1024
    row_bytes = B * Hp * hidden.dtype.itemsize
    if S * row_bytes <= budget:
        hp, Sp, ts = hidden, S, S              # single full-seq block, no pad copy
    else:
        Sp = _round_up(S, 16)
        hp = _pad_to(hidden, (B, Sp, Hp))      # zero seq-padding (mean uses true S)
        ts = _pick_seq_tile(Sp, row_bytes, budget=budget)

    kernel = functools.partial(_mean_clf_kernel, inv_seq_len=1.0 / float(seq_len))
    return pl.pallas_call(
        kernel,
        out_shape=jax.ShapeDtypeStruct((B, Cp), jnp.float32),
        grid=(Sp // ts,),
        in_specs=[
            pl.BlockSpec((B, ts, Hp), lambda s: (0, s, 0)),
            pl.BlockSpec((Hp, Cp), lambda s: (0, 0)),
            pl.BlockSpec((1, Cp), lambda s: (0, 0)),
        ],
        out_specs=pl.BlockSpec((B, Cp), lambda s: (0, 0)),
        scratch_shapes=[pltpu.VMEM((B, Hp), jnp.float32)],
        compiler_params=pltpu.CompilerParams(
            dimension_semantics=("arbitrary",),
            vmem_limit_bytes=_vmem_limit(),
        ),
    )(hp, w, b)


# -----------------------------------------------------------------------------
# JointModel (JAX / Pallas)
# -----------------------------------------------------------------------------
class JointModelPallas:
    """Mirror of the PyTorch JointModel forward semantics."""

    def __init__(self, params, hidden_size):
        self.hidden_size = hidden_size
        self.embed_dim = params["w_hidden"].shape[0]
        self.vocab = params["w_lm"].shape[1]
        self.num_classes = params["w_clf"].shape[1]

        self.Ep = _round_up(self.embed_dim, _LANE)
        self.Hp = _round_up(hidden_size, _LANE)
        self.Vp = _round_up(self.vocab, _LANE)
        self.Cp = _round_up(self.num_classes, _LANE)

        # Pad all feature axes to lane multiples once at construction.  Weights
        # are bf16 for the MXU (f32 accumulation in-kernel); biases stay f32.
        # Zero padding keeps padded hidden columns exactly zero, so padded
        # hidden can be fed to the classifier kernels without slicing.
        self.p = {
            "embed": _pad_to(params["embed"],
                             (params["embed"].shape[0], self.Ep)).astype(jnp.bfloat16),
            "w_hidden": _pad_to(params["w_hidden"], (self.Ep, self.Hp)).astype(jnp.bfloat16),
            "b_hidden": _pad_to(params["b_hidden"], (1, self.Hp)).astype(jnp.float32),
            "w_lm": _pad_to(params["w_lm"], (self.Hp, self.Vp)).astype(jnp.bfloat16),
            "b_lm": _pad_to(params["b_lm"], (1, self.Vp)).astype(jnp.float32),
            "w_clf": _pad_to(params["w_clf"], (self.Hp, self.Cp)).astype(jnp.bfloat16),
            "b_clf": _pad_to(params["b_clf"], (1, self.Cp)).astype(jnp.float32),
        }

    # --------------------------------------------------------------------- LM
    def base_model(self, input_ids, attention_mask, labels, output_hidden_states):
        # TODO(synk): the full LLaMA+LoRA decoder stack is not replicated; this
        # synthetic embedding -> tanh-MLP -> lm_head stand-in produces
        # hidden_states / logits / loss with the same interface.
        p = self.p
        B, S = input_ids.shape
        emb = p["embed"][input_ids]                 # (B, S, Ep) bf16 gather (plain JAX glue)

        M = B * S
        _, Mp = _pick_row_tile(M)
        emb2 = _pad_to(emb.reshape(M, self.Ep), (Mp, self.Ep))

        labels2d = None
        valid = None
        if labels is not None:
            # HF-style causal-LM shift: logits[t] predicts labels[t+1].
            shift_lab = jnp.concatenate(
                [labels[:, 1:], jnp.zeros((B, 1), labels.dtype)], axis=1)
            valid = jnp.concatenate(
                [jnp.ones((B, S - 1), jnp.float32), jnp.zeros((B, 1), jnp.float32)],
                axis=1)
            if attention_mask is not None:
                am = jnp.concatenate(
                    [attention_mask[:, 1:],
                     jnp.zeros((B, 1), attention_mask.dtype)], axis=1)
                valid = valid * am.astype(jnp.float32)
            labels2d = _pad_to(shift_lab.reshape(M, 1).astype(jnp.int32), (Mp, 1))

        logits_p, hidden_p, nll_p = fused_lm_forward(
            emb2, p["w_hidden"], p["b_hidden"], p["w_lm"], p["b_lm"], labels2d,
            emit_hidden=output_hidden_states, true_vocab=self.vocab)

        logits = logits_p[:M, : self.vocab].reshape(B, S, self.vocab)

        hidden_states = None
        hidden_padded = None
        if output_hidden_states:
            hidden_padded = hidden_p[:M].reshape(B, S, self.Hp)      # bf16, padded H
            hidden_states = (hidden_padded[..., : self.hidden_size],)

        loss = None
        if labels is not None:
            # per-token NLL comes from the fused online-softmax CE in-kernel;
            # only the tiny masked reduction stays in plain JAX.
            nll = nll_p[:M, 0].reshape(B, S)
            loss = jnp.sum(nll * valid) / jnp.maximum(jnp.sum(valid), 1.0)

        return {"logits": logits, "hidden_states": hidden_states, "loss": loss,
                "_hidden_padded": hidden_padded}

    # -------------------------------------------------------------- classifier
    def classifier(self, hidden_padded, positions):
        """hidden_padded: (B, S, Hp) bf16 (padded H columns are exactly zero)."""
        p = self.p
        B, S, _ = hidden_padded.shape
        if positions == "last_token":
            # Only the last token is pooled -> never DMA the whole (B, S, H).
            pooled = _pad_to(hidden_padded[:, -1, :], (_round_up(B, 8), self.Hp))
            clf = linear_pallas(pooled, p["w_clf"], p["b_clf"])[:B]
        else:
            # torch reference mean-pools over all S tokens (mask-agnostic).
            clf = mean_pool_classifier_pallas(hidden_padded, p["w_clf"], p["b_clf"],
                                              seq_len=S)
        return clf[:, : self.num_classes]

    # ----------------------------------------------------------------- forward
    def __call__(self, input_ids=None, attention_mask=None, labels=None,
                 output_hidden_states=False, return_dict=False,
                 do_classification=False, classifier_positions="last_token"):
        lm_outputs = self.base_model(input_ids, attention_mask, labels,
                                     output_hidden_states)
        clf_logits = None
        if do_classification:
            if not output_hidden_states:
                raise ValueError(
                    "If do_classification=True, must set output_hidden_states=True.")
            clf_logits = self.classifier(lm_outputs["_hidden_padded"],
                                         classifier_positions)
        return lm_outputs, clf_logits


# -----------------------------------------------------------------------------
# Deterministic parameter init + demo
# -----------------------------------------------------------------------------
def make_params(key, vocab, embed, hidden, num_classes):
    ks = jax.random.split(key, 8)
    s = 0.02
    return {
        "embed": s * jax.random.normal(ks[0], (vocab, embed), jnp.float32),
        "w_hidden": s * jax.random.normal(ks[1], (embed, hidden), jnp.float32),
        "b_hidden": jnp.zeros((1, hidden), jnp.float32),
        "w_lm": s * jax.random.normal(ks[2], (hidden, vocab), jnp.float32),
        "b_lm": jnp.zeros((1, vocab), jnp.float32),
        "w_clf": s * jax.random.normal(ks[3], (hidden, num_classes), jnp.float32),
        "b_clf": jnp.zeros((1, num_classes), jnp.float32),
    }


if __name__ == "__main__":
    B, S = 2, 8
    # Deliberately non-128-multiples so vocab/hidden/class padding paths are exercised.
    VOCAB, EMBED, HIDDEN, NUM_CLASSES = 100, 48, 40, 10

    key = jax.random.PRNGKey(0)
    k_p, k_ids, k_lbl = jax.random.split(key, 3)

    raw = make_params(k_p, VOCAB, EMBED, HIDDEN, NUM_CLASSES)
    model = JointModelPallas(raw, hidden_size=HIDDEN)

    input_ids = jax.random.randint(k_ids, (B, S), 0, VOCAB, dtype=jnp.int32)
    attention_mask = jnp.ones((B, S), dtype=jnp.int32)
    labels = jax.random.randint(k_lbl, (B, S), 0, VOCAB, dtype=jnp.int32)

    lm_outputs, clf_logits = model(
        input_ids=input_ids, attention_mask=attention_mask, labels=labels,
        output_hidden_states=True, return_dict=True,
        do_classification=True, classifier_positions="last_token")
    jax.block_until_ready(lm_outputs["logits"])
    jax.block_until_ready(lm_outputs["loss"])
    jax.block_until_ready(clf_logits)

    # also exercise the mean-pooled classifier branch (no labels -> no CE path)
    _, clf_logits_mean = model(
        input_ids=input_ids, attention_mask=attention_mask,
        output_hidden_states=True, do_classification=True,
        classifier_positions="mean")
    jax.block_until_ready(clf_logits_mean)

    # ---- pure-JAX reference (same bf16-in / f32-accumulate contractions) ----
    emb_r = raw["embed"][input_ids].astype(jnp.bfloat16)
    h_r = jnp.tanh(jnp.dot(emb_r, raw["w_hidden"].astype(jnp.bfloat16),
                           preferred_element_type=jnp.float32) + raw["b_hidden"])
    logits_r = jnp.dot(h_r.astype(jnp.bfloat16), raw["w_lm"].astype(jnp.bfloat16),
                       preferred_element_type=jnp.float32) + raw["b_lm"]
    clf_last_r = jnp.dot(h_r[:, -1, :].astype(jnp.bfloat16),
                         raw["w_clf"].astype(jnp.bfloat16),
                         preferred_element_type=jnp.float32) + raw["b_clf"]
    clf_mean_r = jnp.dot(jnp.mean(h_r, axis=1).astype(jnp.bfloat16),
                         raw["w_clf"].astype(jnp.bfloat16),
                         preferred_element_type=jnp.float32) + raw["b_clf"]
    shift_logits_r = logits_r[:, :-1, :]
    shift_labels_r = labels[:, 1:]
    logp_r = jax.nn.log_softmax(shift_logits_r, axis=-1)
    nll_r = -jnp.take_along_axis(logp_r, shift_labels_r[..., None], axis=-1)[..., 0]
    m_r = attention_mask[:, 1:].astype(jnp.float32)
    loss_r = jnp.sum(nll_r * m_r) / jnp.maximum(jnp.sum(m_r), 1.0)

    assert lm_outputs["logits"].shape == (B, S, VOCAB)
    assert lm_outputs["hidden_states"][-1].shape == (B, S, HIDDEN)
    assert clf_logits.shape == (B, NUM_CLASSES)
    assert clf_logits_mean.shape == (B, NUM_CLASSES)
    assert jnp.allclose(lm_outputs["hidden_states"][-1].astype(jnp.float32),
                        h_r, atol=2e-3, rtol=2e-2)
    assert jnp.allclose(lm_outputs["logits"], logits_r, atol=2e-3, rtol=2e-2)
    assert jnp.allclose(lm_outputs["loss"], loss_r, atol=2e-3, rtol=2e-2)
    assert jnp.allclose(clf_logits, clf_last_r, atol=2e-3, rtol=2e-2)
    assert jnp.allclose(clf_logits_mean, clf_mean_r, atol=2e-3, rtol=2e-2)
    print("KERNEL_OK")
</pallas_src>

<mosaic_0001>
module attributes {stable_mosaic.version = 11 : i64} {
  func.func @_fused_lm_kernel(%arg0: i32, %arg1: i32, %arg2: i32, %arg3: memref<16x128xbf16, #tpu.memory_space<vmem>>, %arg4: memref<128x128xbf16, #tpu.memory_space<vmem>>, %arg5: memref<1x128xf32, #tpu.memory_space<vmem>>, %arg6: memref<128x128xbf16, #tpu.memory_space<vmem>>, %arg7: memref<1x128xf32, #tpu.memory_space<vmem>>, %arg8: memref<16x1xi32, #tpu.memory_space<vmem>>, %arg9: memref<16x128xf32, #tpu.memory_space<vmem>>, %arg10: memref<16x128xbf16, #tpu.memory_space<vmem>>, %arg11: memref<16x1xf32, #tpu.memory_space<vmem>>, %arg12: memref<1x16x128xbf16, #tpu.memory_space<vmem>>, %arg13: memref<16x128xf32, #tpu.memory_space<vmem>>, %arg14: memref<16x1xf32, #tpu.memory_space<vmem>>, %arg15: memref<16x1xf32, #tpu.memory_space<vmem>>, %arg16: memref<16x1xf32, #tpu.memory_space<vmem>>) attributes {dimension_semantics = [#tpu.dimension_semantics<parallel>, #tpu.dimension_semantics<arbitrary>, #tpu.dimension_semantics<arbitrary>], iteration_bounds = array<i64: 1, 1, 1>, scalar_prefetch = 0 : i64, scratch_operands = 5 : i64, tpu.core_type = #tpu.core_type<tc>, window_params = [{transform_indices = @transform_0, window_bounds = array<i64: 16, 128>}, {transform_indices = @transform_1, window_bounds = array<i64: 128, 128>}, {transform_indices = @transform_2, window_bounds = array<i64: 1, 128>}, {transform_indices = @transform_3, window_bounds = array<i64: 128, 128>}, {transform_indices = @transform_4, window_bounds = array<i64: 1, 128>}, {transform_indices = @transform_5, window_bounds = array<i64: 16, 1>}, {transform_indices = @transform_6, window_bounds = array<i64: 16, 128>}, {transform_indices = @transform_7, window_bounds = array<i64: 16, 128>}, {transform_indices = @transform_8, window_bounds = array<i64: 16, 1>}]} {
    %c0_i32 = arith.constant 0 : i32
    %0 = arith.cmpi eq, %arg1, %c0_i32 : i32
    %1 = arith.extui %0 : i1 to i32
    %c0_i32_0 = arith.constant 0 : i32
    %2 = arith.cmpi ne, %1, %c0_i32_0 : i32
    scf.if %2 {
      %c0_21 = arith.constant 0 : index
      %c0_22 = arith.constant 0 : index
      %32 = vector.load %arg3[%c0_21, %c0_22] : memref<16x128xbf16, #tpu.memory_space<vmem>>, vector<16x128xbf16>
      %c0_23 = arith.constant 0 : index
      %c0_24 = arith.constant 0 : index
      %33 = vector.load %arg4[%c0_23, %c0_24] : memref<128x128xbf16, #tpu.memory_space<vmem>>, vector<128x128xbf16>
      %cst_25 = arith.constant dense<0.000000e+00> : vector<16x128xf32>
      %34 = tpu.matmul %32, %33, %cst_25 {dimension_numbers = #tpu.dot_dimension_numbers<[1], [0], [0], [1], [0, 0, 1, 1], [], []>} : vector<16x128xbf16>, vector<128x128xbf16>, vector<16x128xf32> -> vector<16x128xf32>
      %c0_26 = arith.constant 0 : index
      %c0_27 = arith.constant 0 : index
      %35 = vector.load %arg5[%c0_26, %c0_27] : memref<1x128xf32, #tpu.memory_space<vmem>>, vector<1x128xf32>
      %36 = vector.broadcast %35 : vector<1x128xf32> to vector<16x128xf32>
      %37 = arith.addf %34, %36 : vector<16x128xf32>
      %38 = math.tanh %37 : vector<16x128xf32>
      %39 = arith.truncf %38 : vector<16x128xf32> to vector<16x128xbf16>
      %40 = arith.index_cast %arg2 : i32 to index
      %c0_28 = arith.constant 0 : index
      %c0_29 = arith.constant 0 : index
      %41 = vector.load %arg12[%40, %c0_28, %c0_29] : memref<1x16x128xbf16, #tpu.memory_space<vmem>>, vector<1x16x128xbf16>
      %42 = vector.shape_cast %41 : vector<1x16x128xbf16> to vector<16x128xbf16>
      %43 = vector.shape_cast %39 : vector<16x128xbf16> to vector<1x16x128xbf16>
      tpu.vector_store %arg12[%40, %c0_28, %c0_29], %43 {strides = array<i32>} : memref<1x16x128xbf16, #tpu.memory_space<vmem>>, vector<1x16x128xbf16>,
    } else {
    }
    %c0_i32_1 = arith.constant 0 : i32
    %3 = arith.cmpi eq, %arg1, %c0_i32_1 : i32
    %c0_i32_2 = arith.constant 0 : i32
    %4 = arith.cmpi eq, %arg2, %c0_i32_2 : i32
    %5 = arith.andi %3, %4 : i1
    %6 = arith.extui %5 : i1 to i32
    %c0_i32_3 = arith.constant 0 : i32
    %7 = arith.cmpi ne, %6, %c0_i32_3 : i32
    scf.if %7 {
      %c0_21 = arith.constant 0 : index
      %c0_22 = arith.constant 0 : index
      %c0_23 = arith.constant 0 : index
      %32 = vector.load %arg12[%c0_21, %c0_22, %c0_23] : memref<1x16x128xbf16, #tpu.memory_space<vmem>>, vector<1x16x128xbf16>
      %33 = vector.shape_cast %32 : vector<1x16x128xbf16> to vector<16x128xbf16>
      %c0_24 = arith.constant 0 : index
      %c0_25 = arith.constant 0 : index
      %34 = vector.load %arg10[%c0_24, %c0_25] : memref<16x128xbf16, #tpu.memory_space<vmem>>, vector<16x128xbf16>
      tpu.vector_store %arg10[%c0_24, %c0_25], %33 {strides = array<i32>} : memref<16x128xbf16, #tpu.memory_space<vmem>>, vector<16x128xbf16>,
    } else {
    }
    %c0_i32_4 = arith.constant 0 : i32
    %8 = arith.cmpi eq, %arg1, %c0_i32_4 : i32
    %c0_i32_5 = arith.constant 0 : i32
    %9 = arith.cmpi eq, %arg2, %c0_i32_5 : i32
    %10 = arith.andi %8, %9 : i1
    %11 = arith.extui %10 : i1 to i32
    %c0_i32_6 = arith.constant 0 : i32
    %12 = arith.cmpi ne, %11, %c0_i32_6 : i32
    scf.if %12 {
      %cst_21 = arith.constant -1.000000e+30 : f32
      %32 = vector.broadcast %cst_21 : f32 to vector<16x1xf32>
      %c0_22 = arith.constant 0 : index
      %c0_23 = arith.constant 0 : index
      %33 = vector.load %arg14[%c0_22, %c0_23] : memref<16x1xf32, #tpu.memory_space<vmem>>, vector<16x1xf32>
      tpu.vector_store %arg14[%c0_22, %c0_23], %32 {strides = array<i32>} : memref<16x1xf32, #tpu.memory_space<vmem>>, vector<16x1xf32>,
      %cst_24 = arith.constant 0.000000e+00 : f32
      %34 = vector.broadcast %cst_24 : f32 to vector<16x1xf32>
      %c0_25 = arith.constant 0 : index
      %c0_26 = arith.constant 0 : index
      %35 = vector.load %arg15[%c0_25, %c0_26] : memref<16x1xf32, #tpu.memory_space<vmem>>, vector<16x1xf32>
      tpu.vector_store %arg15[%c0_25, %c0_26], %34 {strides = array<i32>} : memref<16x1xf32, #tpu.memory_space<vmem>>, vector<16x1xf32>,
      %cst_27 = arith.constant 0.000000e+00 : f32
      %36 = vector.broadcast %cst_27 : f32 to vector<16x1xf32>
      %c0_28 = arith.constant 0 : index
      %c0_29 = arith.constant 0 : index
      %37 = vector.load %arg16[%c0_28, %c0_29] : memref<16x1xf32, #tpu.memory_space<vmem>>, vector<16x1xf32>
      tpu.vector_store %arg16[%c0_28, %c0_29], %36 {strides = array<i32>} : memref<16x1xf32, #tpu.memory_space<vmem>>, vector<16x1xf32>,
    } else {
    }
    %c0_i32_7 = arith.constant 0 : i32
    %13 = arith.cmpi eq, %arg2, %c0_i32_7 : i32
    %14 = arith.extui %13 : i1 to i32
    %c0_i32_8 = arith.constant 0 : i32
    %15 = arith.cmpi ne, %14, %c0_i32_8 : i32
    scf.if %15 {
      %cst_21 = arith.constant 0.000000e+00 : f32
      %32 = vector.broadcast %cst_21 : f32 to vector<16x128xf32>
      %c0_22 = arith.constant 0 : index
      %c0_23 = arith.constant 0 : index
      %33 = vector.load %arg13[%c0_22, %c0_23] : memref<16x128xf32, #tpu.memory_space<vmem>>, vector<16x128xf32>
      tpu.vector_store %arg13[%c0_22, %c0_23], %32 {strides = array<i32>} : memref<16x128xf32, #tpu.memory_space<vmem>>, vector<16x128xf32>,
    } else {
    }
    %c0 = arith.constant 0 : index
    %c0_9 = arith.constant 0 : index
    %16 = vector.load %arg13[%c0, %c0_9] : memref<16x128xf32, #tpu.memory_space<vmem>>, vector<16x128xf32>
    %17 = arith.index_cast %arg2 : i32 to index
    %c0_10 = arith.constant 0 : index
    %c0_11 = arith.constant 0 : index
    %18 = vector.load %arg12[%17, %c0_10, %c0_11] : memref<1x16x128xbf16, #tpu.memory_space<vmem>>, vector<1x16x128xbf16>
    %19 = vector.shape_cast %18 : vector<1x16x128xbf16> to vector<16x128xbf16>
    %c0_12 = arith.constant 0 : index
    %c0_13 = arith.constant 0 : index
    %20 = vector.load %arg6[%c0_12, %c0_13] : memref<128x128xbf16, #tpu.memory_space<vmem>>, vector<128x128xbf16>
    %cst = arith.constant dense<0.000000e+00> : vector<16x128xf32>
    %21 = tpu.matmul %19, %20, %cst {dimension_numbers = #tpu.dot_dimension_numbers<[1], [0], [0], [1], [0, 0, 1, 1], [], []>} : vector<16x128xbf16>, vector<128x128xbf16>, vector<16x128xf32> -> vector<16x128xf32>
    %22 = arith.addf %16, %21 : vector<16x128xf32>
    %c0_14 = arith.constant 0 : index
    %c0_15 = arith.constant 0 : index
    %23 = vector.load %arg13[%c0_14, %c0_15] : memref<16x128xf32, #tpu.memory_space<vmem>>, vector<16x128xf32>
    tpu.vector_store %arg13[%c0_14, %c0_15], %22 {strides = array<i32>} : memref<16x128xf32, #tpu.memory_space<vmem>>, vector<16x128xf32>,
    %c0_i32_16 = arith.constant 0 : i32
    %24 = arith.cmpi eq, %arg2, %c0_i32_16 : i32
    %25 = arith.extui %24 : i1 to i32
    %c0_i32_17 = arith.constant 0 : i32
    %26 = arith.cmpi ne, %25, %c0_i32_17 : i32
    scf.if %26 {
      %c0_21 = arith.constant 0 : index
      %c0_22 = arith.constant 0 : index
      %32 = vector.load %arg13[%c0_21, %c0_22] : memref<16x128xf32, #tpu.memory_space<vmem>>, vector<16x128xf32>
      %c0_23 = arith.constant 0 : index
      %c0_24 = arith.constant 0 : index
      %33 = vector.load %arg7[%c0_23, %c0_24] : memref<1x128xf32, #tpu.memory_space<vmem>>, vector<1x128xf32>
      %34 = vector.broadcast %33 : vector<1x128xf32> to vector<16x128xf32>
      %35 = arith.addf %32, %34 : vector<16x128xf32>
      %c0_25 = arith.constant 0 : index
      %c0_26 = arith.constant 0 : index
      %36 = vector.load %arg9[%c0_25, %c0_26] : memref<16x128xf32, #tpu.memory_space<vmem>>, vector<16x128xf32>
      tpu.vector_store %arg9[%c0_25, %c0_26], %35 {strides = array<i32>} : memref<16x128xf32, #tpu.memory_space<vmem>>, vector<16x128xf32>,
      %37 = tpu.iota {dimensions = array<i32: 1>} : vector<16x128xi32>
      %c128_i32 = arith.constant 128 : i32
      %38 = arith.muli %arg1, %c128_i32 : i32
      %39 = vector.broadcast %38 : i32 to vector<16x128xi32>
      %40 = arith.addi %37, %39 : vector<16x128xi32>
      %c100_i32 = arith.constant 100 : i32
      %41 = vector.broadcast %c100_i32 : i32 to vector<16x128xi32>
      %42 = arith.cmpi slt, %40, %41 : vector<16x128xi32>
      %cst_27 = arith.constant -1.000000e+30 : f32
      %43 = vector.broadcast %cst_27 : f32 to vector<16x128xf32>
      %44 = arith.select %42, %35, %43 : vector<16x128xi1>, vector<16x128xf32>
      %c0_28 = arith.constant 0 : index
      %c0_29 = arith.constant 0 : index
      %45 = vector.load %arg14[%c0_28, %c0_29] : memref<16x1xf32, #tpu.memory_space<vmem>>, vector<16x1xf32>
      %cst_30 = arith.constant dense<0xFF800000> : vector<16xf32>
      %46 = vector.multi_reduction <maximumf>, %44, %cst_30 [1] : vector<16x128xf32> to vector<16xf32>
      %47 = vector.shape_cast %46 : vector<16xf32> to vector<16x1xf32>
      %48 = arith.maximumf %45, %47 : vector<16x1xf32>
      %c0_31 = arith.constant 0 : index
      %c0_32 = arith.constant 0 : index
      %49 = vector.load %arg15[%c0_31, %c0_32] : memref<16x1xf32, #tpu.memory_space<vmem>>, vector<16x1xf32>
      %c0_33 = arith.constant 0 : index
      %c0_34 = arith.constant 0 : index
      %50 = vector.load %arg14[%c0_33, %c0_34] : memref<16x1xf32, #tpu.memory_space<vmem>>, vector<16x1xf32>
      %51 = arith.subf %50, %48 : vector<16x1xf32>
      %52 = math.exp %51 : vector<16x1xf32>
      %53 = arith.mulf %49, %52 : vector<16x1xf32>
      %54 = vector.broadcast %48 : vector<16x1xf32> to vector<16x128xf32>
      %55 = arith.subf %44, %54 : vector<16x128xf32>
      %56 = math.exp %55 : vector<16x128xf32>
      %cst_35 = arith.constant dense<0.000000e+00> : vector<16xf32>
      %57 = vector.multi_reduction <add>, %56, %cst_35 [1] : vector<16x128xf32> to vector<16xf32>
      %58 = vector.shape_cast %57 : vector<16xf32> to vector<16x1xf32>
      %59 = arith.addf %53, %58 : vector<16x1xf32>
      %c0_36 = arith.constant 0 : index
      %c0_37 = arith.constant 0 : index
      %60 = vector.load %arg15[%c0_36, %c0_37] : memref<16x1xf32, #tpu.memory_space<vmem>>, vector<16x1xf32>
      tpu.vector_store %arg15[%c0_36, %c0_37], %59 {strides = array<i32>} : memref<16x1xf32, #tpu.memory_space<vmem>>, vector<16x1xf32>,
      %c0_38 = arith.constant 0 : index
      %c0_39 = arith.constant 0 : index
      %61 = vector.load %arg14[%c0_38, %c0_39] : memref<16x1xf32, #tpu.memory_space<vmem>>, vector<16x1xf32>
      tpu.vector_store %arg14[%c0_38, %c0_39], %48 {strides = array<i32>} : memref<16x1xf32, #tpu.memory_space<vmem>>, vector<16x1xf32>,
      %c0_40 = arith.constant 0 : index
      %c0_41 = arith.constant 0 : index
      %62 = vector.load %arg8[%c0_40, %c0_41] : memref<16x1xi32, #tpu.memory_space<vmem>>, vector<16x1xi32>
      %63 = vector.broadcast %62 : vector<16x1xi32> to vector<16x128xi32>
      %64 = arith.cmpi eq, %40, %63 : vector<16x128xi32>
      %c0_42 = arith.constant 0 : index
      %c0_43 = arith.constant 0 : index
      %65 = vector.load %arg16[%c0_42, %c0_43] : memref<16x1xf32, #tpu.memory_space<vmem>>, vector<16x1xf32>
      %cst_44 = arith.constant 0.000000e+00 : f32
      %66 = vector.broadcast %cst_44 : f32 to vector<16x128xf32>
      %67 = arith.select %64, %35, %66 : vector<16x128xi1>, vector<16x128xf32>
      %cst_45 = arith.constant dense<0.000000e+00> : vector<16xf32>
      %68 = vector.multi_reduction <add>, %67, %cst_45 [1] : vector<16x128xf32> to vector<16xf32>
      %69 = vector.shape_cast %68 : vector<16xf32> to vector<16x1xf32>
      %70 = arith.addf %65, %69 : vector<16x1xf32>
      %c0_46 = arith.constant 0 : index
      %c0_47 = arith.constant 0 : index
      %71 = vector.load %arg16[%c0_46, %c0_47] : memref<16x1xf32, #tpu.memory_space<vmem>>, vector<16x1xf32>
      tpu.vector_store %arg16[%c0_46, %c0_47], %70 {strides = array<i32>} : memref<16x1xf32, #tpu.memory_space<vmem>>, vector<16x1xf32>,
    } else {
    }
    %c0_i32_18 = arith.constant 0 : i32
    %27 = arith.cmpi eq, %arg1, %c0_i32_18 : i32
    %c0_i32_19 = arith.constant 0 : i32
    %28 = arith.cmpi eq, %arg2, %c0_i32_19 : i32
    %29 = arith.andi %27, %28 : i1
    %30 = arith.extui %29 : i1 to i32
    %c0_i32_20 = arith.constant 0 : i32
    %31 = arith.cmpi ne, %30, %c0_i32_20 : i32
    scf.if %31 {
      %c0_21 = arith.constant 0 : index
      %c0_22 = arith.constant 0 : index
      %32 = vector.load %arg14[%c0_21, %c0_22] : memref<16x1xf32, #tpu.memory_space<vmem>>, vector<16x1xf32>
      %c0_23 = arith.constant 0 : index
      %c0_24 = arith.constant 0 : index
      %33 = vector.load %arg15[%c0_23, %c0_24] : memref<16x1xf32, #tpu.memory_space<vmem>>, vector<16x1xf32>
      %34 = math.log %33 : vector<16x1xf32>
      %35 = arith.addf %32, %34 : vector<16x1xf32>
      %c0_25 = arith.constant 0 : index
      %c0_26 = arith.constant 0 : index
      %36 = vector.load %arg16[%c0_25, %c0_26] : memref<16x1xf32, #tpu.memory_space<vmem>>, vector<16x1xf32>
      %37 = arith.subf %35, %36 : vector<16x1xf32>
      %c0_27 = arith.constant 0 : index
      %c0_28 = arith.constant 0 : index
      %38 = vector.load %arg11[%c0_27, %c0_28] : memref<16x1xf32, #tpu.memory_space<vmem>>, vector<16x1xf32>
      tpu.vector_store %arg11[%c0_27, %c0_28], %37 {strides = array<i32>} : memref<16x1xf32, #tpu.memory_space<vmem>>, vector<16x1xf32>,
    } else {
    }
    return
  }
  func.func @transform_0(%arg0: i32, %arg1: i32, %arg2: i32) -> (i32, i32) {
    %c0_i32 = arith.constant 0 : i32
    %c0_i32_0 = arith.constant 0 : i32
    return %arg0, %c0_i32 : i32, i32
  }
  func.func @transform_1(%arg0: i32, %arg1: i32, %arg2: i32) -> (i32, i32) {
    %c1_i32 = arith.constant 1 : i32
    %0 = arith.muli %arg1, %c1_i32 : i32
    %1 = arith.addi %arg2, %0 : i32
    %c0_i32 = arith.constant 0 : i32
    %2 = arith.minsi %1, %c0_i32 : i32
    %c0_i32_0 = arith.constant 0 : i32
    %c0_i32_1 = arith.constant 0 : i32
    return %c0_i32_0, %2 : i32, i32
  }
  func.func @transform_2(%arg0: i32, %arg1: i32, %arg2: i32) -> (i32, i32) {
    %c1_i32 = arith.constant 1 : i32
    %0 = arith.muli %arg1, %c1_i32 : i32
    %1 = arith.addi %arg2, %0 : i32
    %c0_i32 = arith.constant 0 : i32
    %2 = arith.minsi %1, %c0_i32 : i32
    %c0_i32_0 = arith.constant 0 : i32
    %c0_i32_1 = arith.constant 0 : i32
    return %c0_i32_0, %2 : i32, i32
  }
  func.func @transform_3(%arg0: i32, %arg1: i32, %arg2: i32) -> (i32, i32) {
    %c0_i32 = arith.constant 0 : i32
    return %arg2, %arg1 : i32, i32
  }
  func.func @transform_4(%arg0: i32, %arg1: i32, %arg2: i32) -> (i32, i32) {
    %c0_i32 = arith.constant 0 : i32
    %c0_i32_0 = arith.constant 0 : i32
    return %c0_i32, %arg1 : i32, i32
  }
  func.func @transform_5(%arg0: i32, %arg1: i32, %arg2: i32) -> (i32, i32) {
    %c0_i32 = arith.constant 0 : i32
    %c0_i32_0 = arith.constant 0 : i32
    return %arg0, %c0_i32 : i32, i32
  }
  func.func @transform_6(%arg0: i32, %arg1: i32, %arg2: i32) -> (i32, i32) {
    %c0_i32 = arith.constant 0 : i32
    return %arg0, %arg1 : i32, i32
  }
  func.func @transform_7(%arg0: i32, %arg1: i32, %arg2: i32) -> (i32, i32) {
    %c0_i32 = arith.constant 0 : i32
    %c0_i32_0 = arith.constant 0 : i32
    return %arg0, %c0_i32 : i32, i32
  }
  func.func @transform_8(%arg0: i32, %arg1: i32, %arg2: i32) -> (i32, i32) {
    %c0_i32 = arith.constant 0 : i32
    %c0_i32_0 = arith.constant 0 : i32
    return %arg0, %c0_i32 : i32, i32
  }
}

</mosaic_0001>

<llo_original>
// kernel: tpu_custom_call.1
$region0: #{tpu_custom_call.1}
  #allocation0 [shape = 'u32[]', space=smem, size = 0x4, offset = 0x4, fixed_abs, tag = 'smem constant byte address 0x4 - core index']
  #allocation1 [shape = 'u32[144,128]{1,0:T(1,128)}', space=vmem, size = 0x12000, scoped, tag = 'internal scratch']
  #allocation2 [shape = 'bf16[1,16,128]{2,1,0:T(16,128)(2,1)}', space=vmem, size = 0x1000, scoped, tag = 'scratch operand']
  #allocation3 [shape = 'f32[16,128]{1,0:T(8,128)}', space=vmem, size = 0x2000, scoped, tag = 'scratch operand']
  #allocation4 [shape = 'f32[16,1]{1,0:T(8,128)}', space=vmem, size = 0x2000, scoped, tag = 'scratch operand']
  #allocation5 [shape = 'f32[16,1]{1,0:T(8,128)}', space=vmem, size = 0x2000, scoped, tag = 'scratch operand']
  #allocation6 [shape = 'f32[16,1]{1,0:T(8,128)}', space=vmem, size = 0x2000, scoped, tag = 'scratch operand']
  %s0 = inlined_call_operand.vmem [shape: bf16[16,128], index: 0, kind: input, shape index: {}]
  %s1 = inlined_call_operand.hbm [shape: bf16[128,128], index: 1, kind: input, shape index: {}]
  %s2 = inlined_call_operand.vmem [shape: f32[1,128], index: 2, kind: input, shape index: {}]
  %s3 = inlined_call_operand.hbm [shape: bf16[128,128], index: 3, kind: input, shape index: {}]
  %s4 = inlined_call_operand.vmem [shape: f32[1,128], index: 4, kind: input, shape index: {}]
  %s5 = inlined_call_operand.vmem [shape: s32[16,1], index: 5, kind: input, shape index: {}]
  %s6 = inlined_call_operand.hbm [shape: f32[16,128], index: 6, kind: output, shape index: {0}]
  %s7 = inlined_call_operand.hbm [shape: bf16[16,128], index: 7, kind: output, shape index: {1}]
  %s8 = inlined_call_operand.vmem [shape: f32[16,1], index: 8, kind: output, shape index: {2}]
  %9 = xla_tuple %s6, %s7, %s8
  %s10 = sld [smem:[#allocation0]]
  $region78: #{tpu_custom_call.1} parent=0
    _
  %s12 = ssub.s32 1, %s10
  %s13 = scalar_select 0, %s12, %s10
  $region1: #{tpu_custom_call.1} parent=0
    #allocation7 [shape = 'u8[32768]{0}', space=vmem, size = 0x8000, scoped, tag = 'input window, operand 1, single buffered']
    #allocation8 [shape = 's32[1]{0}', space=sflag, size = 0x4, scoped, tag = 'scoped memory for tpu_custom_call.1']
    #allocation9 [shape = 's32[1]{0}', space=sflag, size = 0x4, scoped, tag = 'scoped memory for tpu_custom_call.1']
    #allocation10 [shape = 'u8[32768]{0}', space=vmem, size = 0x8000, scoped, tag = 'input window, operand 3, single buffered']
    #allocation11 [shape = 's32[1]{0}', space=sflag, size = 0x4, scoped, tag = 'scoped memory for tpu_custom_call.1']
    #allocation12 [shape = 'u8[8192]{0}', space=vmem, size = 0x2000, scoped, tag = 'output window, operand 0, single buffered']
    #allocation13 [shape = 'u8[4096]{0}', space=vmem, size = 0x1000, scoped, tag = 'output window, operand 1, single buffered']
    #allocation14 [shape = 's32[1]{0}', space=sflag, size = 0x4, scoped, tag = 'scoped memory for tpu_custom_call.1']
    %14 = vsyncpa [#allocation8], 0
    %15 = vsyncpa [#allocation11], 0
    %16 = vsyncpa [#allocation9], 0
    %17 = vsyncpa [#allocation14], 0
    // Predicated region
    $region2: #{tpu_custom_call.1} parent=1 // pred_check
      _
    $region3: #{tpu_custom_call.1} parent=1 // pred_check_branch
      %19 = sbr.rel (0) target = $region5
    $region4: #{tpu_custom_call.1} parent=1 // pred_region
      _
    $region5: #{tpu_custom_call.1} parent=1 // pred_fallthru
      _
    // Predicated region
    $region6: #{tpu_custom_call.1} parent=1 // pred_check
      _
    $region7: #{tpu_custom_call.1} parent=1 // pred_check_branch
      %21 = sbr.rel (0) target = $region9
    $region8: #{tpu_custom_call.1} parent=1 // pred_region
      %s22 = sadd.s32 0, 0
      %p23 = scmp.lt.s32.totalorder %s22, 0
      %s24 = scalar_select %p23, %s22, 0
      %s26 = ssub.s32 1024, 1024
      %27 = vsyncadd [#allocation8], %s26
      %s28 = smul.addr %s24, 64
      %s29 = scalar_lea.hbm %s1, %s28
      %s30 = sshll.u32 [#allocation7], 4
      %s31 = int_to_ptr.vmem [resolvable:$true] %s30
      %36 = dma.hbm_to_vmem [thread:$0]  %s29, 1024, %s31, [#allocation8], 64, 64, 4
    $region9: #{tpu_custom_call.1} parent=1 // pred_fallthru
      _
    // Predicated region
    $region10: #{tpu_custom_call.1} parent=1 // pred_check
      _
    $region11: #{tpu_custom_call.1} parent=1 // pred_check_branch
      %38 = sbr.rel (0) target = $region13
    $region12: #{tpu_custom_call.1} parent=1 // pred_region
      %s39 = sadd.s32 0, 0
      %p40 = scmp.lt.s32.totalorder %s39, 0
      %s41 = scalar_select %p40, %s39, 0
      %p42 = scmp.lt.s32.totalorder %s41, 0
      %s43 = scalar_select %p42, %s41, 0
      %s44 = scalar_lea.vmem %s2, %s43
      %s45 = sadd.s32 0, 0
      %p46 = scmp.lt.s32.totalorder %s45, 0
      %s47 = scalar_select %p46, %s45, 0
    $region13: #{tpu_custom_call.1} parent=1 // pred_fallthru
      _
    // Predicated region
    $region14: #{tpu_custom_call.1} parent=1 // pred_check
      _
    $region15: #{tpu_custom_call.1} parent=1 // pred_check_branch
      %49 = sbr.rel (0) target = $region17
    $region16: #{tpu_custom_call.1} parent=1 // pred_region
      %s51 = ssub.s32 1024, 1024
      %52 = vsyncadd [#allocation11], %s51
      %s53 = sshll.u32 [#allocation10], 4
      %s54 = int_to_ptr.vmem [resolvable:$true] %s53
      %59 = dma.hbm_to_vmem [thread:$0]  %s3, 1024, %s54, [#allocation11], 64, 64, 4
    $region17: #{tpu_custom_call.1} parent=1 // pred_fallthru
      _
    // Predicated region
    $region18: #{tpu_custom_call.1} parent=1 // pred_check
      _
    $region19: #{tpu_custom_call.1} parent=1 // pred_check_branch
      %61 = sbr.rel (0) target = $region21
    $region20: #{tpu_custom_call.1} parent=1 // pred_region
      _
    $region21: #{tpu_custom_call.1} parent=1 // pred_fallthru
      _
    // Predicated region
    $region22: #{tpu_custom_call.1} parent=1 // pred_check
      _
    $region23: #{tpu_custom_call.1} parent=1 // pred_check_branch
      %63 = sbr.rel (0) target = $region25
    $region24: #{tpu_custom_call.1} parent=1 // pred_region
      _
    $region25: #{tpu_custom_call.1} parent=1 // pred_fallthru
      _
    // Predicated region
    $region26: #{tpu_custom_call.1} parent=1 // pred_check
      _
    $region27: #{tpu_custom_call.1} parent=1 // pred_check_branch
      %65 = sbr.rel (0) target = $region29
    $region28: #{tpu_custom_call.1} parent=1 // pred_region
      %66 = dma.done [#allocation8], 1024
    $region29: #{tpu_custom_call.1} parent=1 // pred_fallthru
      _
    // Predicated region
    $region30: #{tpu_custom_call.1} parent=1 // pred_check
      _
    $region31: #{tpu_custom_call.1} parent=1 // pred_check_branch
      %68 = sbr.rel (0) target = $region33
    $region32: #{tpu_custom_call.1} parent=1 // pred_region
      %69 = dma.done [#allocation11], 1024
    $region33: #{tpu_custom_call.1} parent=1 // pred_fallthru
      _
    %s70 = sadd.s32 0, 0
    %p71 = scmp.lt.s32.totalorder %s70, 0
    %s72 = scalar_select %p71, %s70, 0
    %p73 = scmp.lt.s32.totalorder %s72, 0
    %s74 = scalar_select %p73, %s72, 0
    %s75 = scalar_lea.vmem %s2, %s74
    %s76 = sadd.s32 0, 0
    %p77 = scmp.lt.s32.totalorder %s76, 0
    %s78 = scalar_select %p77, %s76, 0
    %s79 = sadd.s32 0, 0
    %p80 = scmp.lt.s32.totalorder %s79, 0
    %s81 = scalar_select %p80, %s79, 0
    %p82 = scmp.lt.s32.totalorder %s81, 0
    %s83 = scalar_select %p82, %s81, 0
    %s84 = scalar_lea.vmem %s2, %s83
    %s85 = sadd.s32 0, 0
    %p86 = scmp.lt.s32.totalorder %s85, 0
    %s87 = scalar_select %p86, %s85, 0
    %p89 = scmp.eq.s32.totalorder 0, 0
    // Predicated region
    $region34: #{tpu_custom_call.1} parent=1 // pred_check
      %p90 = pneg %p89
    $region35: #{tpu_custom_call.1} parent=1 // pred_check_branch
      %92 = sbr.rel (%p90) target = $region37
    $region36: #{tpu_custom_call.1} parent=1 // pred_region
      %v93 = vld [vmem:[%s0] sm:$0xf]
      %v94 = vld [vmem:[%s0 + $0x4] sm:$0xf]
      %v95 = vld [vmem:[#allocation7] sm:$0xf]
      %v96 = vld [vmem:[#allocation7 + $0x4] sm:$0xf]
      %v97 = vld [vmem:[#allocation7 + $0x8] sm:$0xf]
      %v98 = vld [vmem:[#allocation7 + $0xc] sm:$0xf]
      %v99 = vld [vmem:[#allocation7 + $0x10] sm:$0xf]
      %v100 = vld [vmem:[#allocation7 + $0x14] sm:$0xf]
      %v101 = vld [vmem:[#allocation7 + $0x18] sm:$0xf]
      %v102 = vld [vmem:[#allocation7 + $0x1c] sm:$0xf]
      %v103 = vld [vmem:[#allocation7 + $0x20] sm:$0xf]
      %v104 = vld [vmem:[#allocation7 + $0x24] sm:$0xf]
      %v105 = vld [vmem:[#allocation7 + $0x28] sm:$0xf]
      %v106 = vld [vmem:[#allocation7 + $0x2c] sm:$0xf]
      %v107 = vld [vmem:[#allocation7 + $0x30] sm:$0xf]
      %v108 = vld [vmem:[#allocation7 + $0x34] sm:$0xf]
      %v109 = vld [vmem:[#allocation7 + $0x38] sm:$0xf]
      %v110 = vld [vmem:[#allocation7 + $0x3c] sm:$0xf]
      %v111 = vld [vmem:[%s84] sm:$0x1]
      %v113 = vlaneseq
      %v114 = vshrl.u32 %v113, 7
      %v115 = vsub.s32 0, %v114
      %v116 = vrot.slane %v111, %v115
      %v120 = vunpack.c.l.b16 %v93
      %v121 = vunpack.c.l.b16 %v94
      %v122 = vpack.c.b16 %v121, %v120
      %v140 = vunpack.c.l.b16 %v95
      %v141 = vunpack.c.l.b16 %v96
      %v142 = vunpack.c.l.b16 %v97
      %v143 = vunpack.c.l.b16 %v98
      %v144 = vunpack.c.l.b16 %v99
      %v145 = vunpack.c.l.b16 %v100
      %v146 = vunpack.c.l.b16 %v101
      %v147 = vunpack.c.l.b16 %v102
      %v148 = vunpack.c.l.b16 %v103
      %v149 = vunpack.c.l.b16 %v104
      %v150 = vunpack.c.l.b16 %v105
      %v151 = vunpack.c.l.b16 %v106
      %v152 = vunpack.c.l.b16 %v107
      %v153 = vunpack.c.l.b16 %v108
      %v154 = vunpack.c.l.b16 %v109
      %v155 = vunpack.c.l.b16 %v110
      %v156 = vpack.c.b16 %v141, %v140
      %v157 = vpack.c.b16 %v143, %v142
      %v158 = vpack.c.b16 %v145, %v144
      %v159 = vpack.c.b16 %v147, %v146
      %v160 = vpack.c.b16 %v149, %v148
      %v161 = vpack.c.b16 %v151, %v150
      %v162 = vpack.c.b16 %v153, %v152
      %v163 = vpack.c.b16 %v155, %v154
      %172 = vmatprep.subr.bf16.mxu0 0
      %173 = vmatpush1.bf16.msra.mxu0 %v156
      %174 = vmatprep.subr.bf16.mxu0 0
      %175 = vmatpush1.bf16.msra.mxu0 %v157
      %176 = vmatprep.subr.bf16.mxu0 0
      %177 = vmatpush1.bf16.msra.mxu0 %v158
      %178 = vmatprep.subr.bf16.mxu0 0
      %179 = vmatpush1.bf16.msra.mxu0 %v159
      %180 = vmatprep.subr.bf16.mxu0 0
      %181 = vmatpush1.bf16.msra.mxu0 %v160
      %182 = vmatprep.subr.bf16.mxu0 0
      %183 = vmatpush1.bf16.msra.mxu0 %v161
      %184 = vmatprep.subr.bf16.mxu0 0
      %185 = vmatpush1.bf16.msra.mxu0 %v162
      %186 = vmatprep.subr.bf16.mxu0 0
      %187 = vmatpush1.bf16.msra.mxu0 %v163
      %188 = vmatprep.subr.bf16.mxu0 0
      %189 = vmatpush1.bf16.msra.mxu0 0
      %190 = vmatprep.subr.bf16.mxu0 0
      %191 = vmatpush1.bf16.msra.mxu0 0
      %192 = vmatprep.subr.bf16.mxu0 0
      %193 = vmatpush1.bf16.msra.mxu0 0
      %194 = vmatprep.subr.bf16.mxu0 0
      %195 = vmatpush1.bf16.msra.mxu0 0
      %196 = vmatprep.subr.bf16.mxu0 0
      %197 = vmatpush1.bf16.msra.mxu0 0
      %198 = vmatprep.subr.bf16.mxu0 0
      %199 = vmatpush1.bf16.msra.mxu0 0
      %200 = vmatprep.subr.bf16.mxu0 0
      %201 = vmatpush1.bf16.msra.mxu0 0
      %202 = vmatprep.subr.bf16.mxu0 0
      %203 = vmatpush1.bf16.msra.mxu0 0
      %204 = vmatprep.mubr.bf16.mxu0 0
      %205 = vmatmul.mubr.bf16.gmra.mrb[0].mxu0 %v122
      %v206 = vpop.f32.mrb[0].mxu0
      %v207 = vadd.f32 %v116, %v206
      %v208 = vpop.f32.mrb[0].mxu0
      %v209 = vpop.f32.mrb[0].mxu0
      %v210 = vadd.f32 %v116, %v209
      %v211 = vpop.f32.mrb[0].mxu0
      %212 = vdwg.mxu0
      %v213 = vtanh.pop %v207
      %v214 = vtanh.pop %v210
      %v215 = vpack.c.bf16 %v214, %v213
      %216 = vst [vmem:[#allocation2] sm:$0xff] %v215
    $region37: #{tpu_custom_call.1} parent=1 // pred_fallthru
      _
    %p217 = scmp.eq.s32.totalorder 0, 0
    %p218 = pnand %p89, %p217
    %p219 = pneg %p218
    // Predicated region
    $region38: #{tpu_custom_call.1} parent=1 // pred_check
      _
    $region39: #{tpu_custom_call.1} parent=1 // pred_check_branch
      %221 = sbr.rel (%p218) target = $region41
    $region40: #{tpu_custom_call.1} parent=1 // pred_region
      %v222 = vld [vmem:[#allocation2] sm:$0xff]
      %v224 = vunpack.c.l.b16 %v222
      %v225 = vunpack.c.h.b16 %v222
      %v226 = vpack.c.b16 %v224, %v224
      %v227 = vpack.c.b16 %v225, %v225
      %230 = vst [vmem:[#allocation13] sm:$0xf] %v226
      %231 = vst [vmem:[#allocation13 + $0x4] sm:$0xf] %v227
      %vm232 = vcmask 7168
      %233 = vst.msk [vmem:[#allocation4] sm:$0xff] %vm232, -1e+30
      %234 = vst.msk [vmem:[#allocation4 + $0x8] sm:$0xff] %vm232, -1e+30
      %235 = vst.msk [vmem:[#allocation5] sm:$0xff] %vm232, 0.0
      %236 = vst.msk [vmem:[#allocation5 + $0x8] sm:$0xff] %vm232, 0.0
      %237 = vst.msk [vmem:[#allocation6] sm:$0xff] %vm232, 0.0
      %238 = vst.msk [vmem:[#allocation6 + $0x8] sm:$0xff] %vm232, 0.0
    $region41: #{tpu_custom_call.1} parent=1 // pred_fallthru
      _
    // Predicated region
    $region42: #{tpu_custom_call.1} parent=1 // pred_check
      %p239 = pneg %p217
    $region43: #{tpu_custom_call.1} parent=1 // pred_check_branch
      %241 = sbr.rel (%p239) target = $region45
    $region44: #{tpu_custom_call.1} parent=1 // pred_region
      %242 = vst [vmem:[#allocation3] sm:$0xff] 0.0
      %243 = vst [vmem:[#allocation3 + $0x8] sm:$0xff] 0.0
    $region45: #{tpu_custom_call.1} parent=1 // pred_fallthru
      _
    %v244 = vld [vmem:[#allocation3] sm:$0xff]
    %v245 = vld [vmem:[#allocation3 + $0x8] sm:$0xff]
    %v246 = vld [vmem:[#allocation2] sm:$0xff]
    %v247 = vld [vmem:[#allocation10] sm:$0xf]
    %v248 = vld [vmem:[#allocation10 + $0x4] sm:$0xf]
    %v249 = vld [vmem:[#allocation10 + $0x8] sm:$0xf]
    %v250 = vld [vmem:[#allocation10 + $0xc] sm:$0xf]
    %v251 = vld [vmem:[#allocation10 + $0x10] sm:$0xf]
    %v252 = vld [vmem:[#allocation10 + $0x14] sm:$0xf]
    %v253 = vld [vmem:[#allocation10 + $0x18] sm:$0xf]
    %v254 = vld [vmem:[#allocation10 + $0x1c] sm:$0xf]
    %v255 = vld [vmem:[#allocation10 + $0x20] sm:$0xf]
    %v256 = vld [vmem:[#allocation10 + $0x24] sm:$0xf]
    %v257 = vld [vmem:[#allocation10 + $0x28] sm:$0xf]
    %v258 = vld [vmem:[#allocation10 + $0x2c] sm:$0xf]
    %v259 = vld [vmem:[#allocation10 + $0x30] sm:$0xf]
    %v260 = vld [vmem:[#allocation10 + $0x34] sm:$0xf]
    %v261 = vld [vmem:[#allocation10 + $0x38] sm:$0xf]
    %v262 = vld [vmem:[#allocation10 + $0x3c] sm:$0xf]
    %v279 = vunpack.c.l.b16 %v247
    %v280 = vunpack.c.l.b16 %v248
    %v281 = vunpack.c.l.b16 %v249
    %v282 = vunpack.c.l.b16 %v250
    %v283 = vunpack.c.l.b16 %v251
    %v284 = vunpack.c.l.b16 %v252
    %v285 = vunpack.c.l.b16 %v253
    %v286 = vunpack.c.l.b16 %v254
    %v287 = vunpack.c.l.b16 %v255
    %v288 = vunpack.c.l.b16 %v256
    %v289 = vunpack.c.l.b16 %v257
    %v290 = vunpack.c.l.b16 %v258
    %v291 = vunpack.c.l.b16 %v259
    %v292 = vunpack.c.l.b16 %v260
    %v293 = vunpack.c.l.b16 %v261
    %v294 = vunpack.c.l.b16 %v262
    %v295 = vpack.c.b16 %v280, %v279
    %v296 = vpack.c.b16 %v282, %v281
    %v297 = vpack.c.b16 %v284, %v283
    %v298 = vpack.c.b16 %v286, %v285
    %v299 = vpack.c.b16 %v288, %v287
    %v300 = vpack.c.b16 %v290, %v289
    %v301 = vpack.c.b16 %v292, %v291
    %v302 = vpack.c.b16 %v294, %v293
    %311 = vmatprep.subr.bf16.mxu0 0
    %312 = vmatpush1.bf16.msra.mxu0 %v295
    %313 = vmatprep.subr.bf16.mxu0 0
    %314 = vmatpush1.bf16.msra.mxu0 %v296
    %315 = vmatprep.subr.bf16.mxu0 0
    %316 = vmatpush1.bf16.msra.mxu0 %v297
    %317 = vmatprep.subr.bf16.mxu0 0
    %318 = vmatpush1.bf16.msra.mxu0 %v298
    %319 = vmatprep.subr.bf16.mxu0 0
    %320 = vmatpush1.bf16.msra.mxu0 %v299
    %321 = vmatprep.subr.bf16.mxu0 0
    %322 = vmatpush1.bf16.msra.mxu0 %v300
    %323 = vmatprep.subr.bf16.mxu0 0
    %324 = vmatpush1.bf16.msra.mxu0 %v301
    %325 = vmatprep.subr.bf16.mxu0 0
    %326 = vmatpush1.bf16.msra.mxu0 %v302
    %327 = vmatprep.subr.bf16.mxu0 0
    %328 = vmatpush1.bf16.msra.mxu0 0
    %329 = vmatprep.subr.bf16.mxu0 0
    %330 = vmatpush1.bf16.msra.mxu0 0
    %331 = vmatprep.subr.bf16.mxu0 0
    %332 = vmatpush1.bf16.msra.mxu0 0
    %333 = vmatprep.subr.bf16.mxu0 0
    %334 = vmatpush1.bf16.msra.mxu0 0
    %335 = vmatprep.subr.bf16.mxu0 0
    %336 = vmatpush1.bf16.msra.mxu0 0
    %337 = vmatprep.subr.bf16.mxu0 0
    %338 = vmatpush1.bf16.msra.mxu0 0
    %339 = vmatprep.subr.bf16.mxu0 0
    %340 = vmatpush1.bf16.msra.mxu0 0
    %341 = vmatprep.subr.bf16.mxu0 0
    %342 = vmatpush1.bf16.msra.mxu0 0
    %343 = vmatprep.mubr.bf16.mxu0 0
    %344 = vmatmul.mubr.bf16.gmra.mrb[0].mxu0 %v246
    %v345 = vpop.f32.mrb[0].mxu0
    %v346 = vadd.f32 0.0, %v345
    %v347 = vpop.f32.mrb[0].mxu0
    %v348 = vpop.f32.mrb[0].mxu0
    %v349 = vadd.f32 0.0, %v348
    %v350 = vpop.f32.mrb[0].mxu0
    %351 = vdwg.mxu0
    %v352 = vadd.f32 %v244, %v346
    %v353 = vadd.f32 %v245, %v349
    %354 = vst [vmem:[#allocation3] sm:$0xff] %v352
    %355 = vst [vmem:[#allocation3 + $0x8] sm:$0xff] %v353
    // Predicated region
    $region46: #{tpu_custom_call.1} parent=1 // pred_check
      %p356 = pneg %p217
    $region47: #{tpu_custom_call.1} parent=1 // pred_check_branch
      %358 = sbr.rel (%p356) target = $region49
    $region48: #{tpu_custom_call.1} parent=1 // pred_region
      %v359 = vld [vmem:[#allocation3] sm:$0xff]
      %v360 = vld [vmem:[#allocation3 + $0x8] sm:$0xff]
      %v361 = vld [vmem:[%s4] sm:$0x1]
      %v363 = vlaneseq
      %v364 = vshrl.u32 %v363, 7
      %v365 = vsub.s32 0, %v364
      %v366 = vrot.slane %v361, %v365
      %v368 = vadd.f32 %v359, %v366
      %v369 = vadd.f32 %v360, %v366
      %370 = vst [vmem:[#allocation12] sm:$0xff] %v368
      %371 = vst [vmem:[#allocation12 + $0x8] sm:$0xff] %v369
      %v372 = vlaneseq
      %v373 = vand.u32 %v372, 127
      %s374 = smul.u32 0, 128
      %v375 = vstv %s374
      %v376 = vadd.s32 %v373, %v375
      %vm377 = vcmp.lt.s32.totalorder %v376, 100
      %v378 = vsel %vm377, %v368, -1e+30
      %v379 = vsel %vm377, %v369, -1e+30
      %v380 = vld [vmem:[#allocation4] sm:$0xff]
      %v381 = vld [vmem:[#allocation4 + $0x8] sm:$0xff]
      %382 = vmax.xlane.f32.xlu0 %v378
      %v383 = vpop.xlane.xlu0 %382
      %384 = vmax.xlane.f32.xlu0 %v379
      %v385 = vpop.xlane.xlu0 %384
      %v386 = vmax.f32 %v380, %v383
      %v387 = vmax.f32 %v381, %v385
      %v388 = vld [vmem:[#allocation5] sm:$0xff]
      %v389 = vld [vmem:[#allocation5 + $0x8] sm:$0xff]
      %v390 = vsub.f32 %v380, %v386
      %v391 = vsub.f32 %v381, %v387
      %v392 = vmul.f32 %v390, 1.442695
      %v393 = vpow.pop %v392
      %v394 = vmul.f32 %v391, 1.442695
      %v395 = vpow.pop %v394
      %v396 = vmul.f32 %v388, %v393
      %v397 = vmul.f32 %v389, %v395
      %399 = vset.pattern.permute.xlu0 0
      %400 = vperm.xlu0 %399, %v386
      %v401 = vpop.permute.xlu0 %400
      %404 = vset.pattern.permute.xlu0 0
      %405 = vperm.xlu0 %404, %v387
      %v406 = vpop.permute.xlu0 %405
      %v408 = vsub.f32 %v378, %v401
      %v409 = vsub.f32 %v379, %v406
      %v410 = vmul.f32 %v408, 1.442695
      %v411 = vpow.pop %v410
      %v412 = vmul.f32 %v409, 1.442695
      %v413 = vpow.pop %v412
      %414 = vadd.xlane.f32.xlu0 %v411
      %v415 = vpop.xlane.xlu0 %414
      %416 = vadd.xlane.f32.xlu0 %v413
      %v417 = vpop.xlane.xlu0 %416
      %v418 = vadd.f32 %v396, %v415
      %v419 = vadd.f32 %v397, %v417
      %vm420 = vcmask 7168
      %421 = vst.msk [vmem:[#allocation5] sm:$0xff] %vm420, %v418
      %422 = vst.msk [vmem:[#allocation5 + $0x8] sm:$0xff] %vm420, %v419
      %423 = vst.msk [vmem:[#allocation4] sm:$0xff] %vm420, %v386
      %424 = vst.msk [vmem:[#allocation4 + $0x8] sm:$0xff] %vm420, %v387
      %v425 = vld [vmem:[%s5] sm:$0xff]
      %v426 = vld [vmem:[%s5 + $0x8] sm:$0xff]
      %427 = vset.pattern.permute.xlu0 0
      %428 = vperm.xlu0 %427, %v425
      %v429 = vpop.permute.xlu0 %428
      %430 = vset.pattern.permute.xlu0 0
      %431 = vperm.xlu0 %430, %v426
      %v432 = vpop.permute.xlu0 %431
      %vm433 = vcmp.eq.s32.totalorder %v376, %v429
      %vm434 = vcmp.eq.s32.totalorder %v376, %v432
      %v435 = vld [vmem:[#allocation6] sm:$0xff]
      %v436 = vld [vmem:[#allocation6 + $0x8] sm:$0xff]
      %v437 = vsel %vm433, %v368, 0.0
      %v438 = vsel %vm434, %v369, 0.0
      %439 = vadd.xlane.f32.xlu0 %v437
      %v440 = vpop.xlane.xlu0 %439
      %441 = vadd.xlane.f32.xlu0 %v438
      %v442 = vpop.xlane.xlu0 %441
      %v443 = vadd.f32 %v435, %v440
      %v444 = vadd.f32 %v436, %v442
      %445 = vst.msk [vmem:[#allocation6] sm:$0xff] %vm420, %v443
      %446 = vst.msk [vmem:[#allocation6 + $0x8] sm:$0xff] %vm420, %v444
    $region49: #{tpu_custom_call.1} parent=1 // pred_fallthru
      _
    // Predicated region
    $region50: #{tpu_custom_call.1} parent=1 // pred_check
      _
    $region51: #{tpu_custom_call.1} parent=1 // pred_check_branch
      %448 = sbr.rel (%p218) target = $region53
    $region52: #{tpu_custom_call.1} parent=1 // pred_region
      %v449 = vld [vmem:[#allocation4] sm:$0xff]
      %v450 = vld [vmem:[#allocation4 + $0x8] sm:$0xff]
      %v451 = vld [vmem:[#allocation5] sm:$0xff]
      %v452 = vld [vmem:[#allocation5 + $0x8] sm:$0xff]
      %v453 = vlog2.pop %v451
      %v454 = vmul.f32 %v453, 0.6931472
      %v455 = vlog2.pop %v452
      %v456 = vmul.f32 %v455, 0.6931472
      %v457 = vadd.f32 %v449, %v454
      %v458 = vadd.f32 %v450, %v456
      %v459 = vld [vmem:[#allocation6] sm:$0xff]
      %v460 = vld [vmem:[#allocation6 + $0x8] sm:$0xff]
      %v461 = vsub.f32 %v457, %v459
      %v462 = vsub.f32 %v458, %v460
      %vm463 = vcmask 7168
      %464 = vst.msk [vmem:[%s8] sm:$0xff] %vm463, %v461
      %465 = vst.msk [vmem:[%s8 + $0x8] sm:$0xff] %vm463, %v462
    $region53: #{tpu_custom_call.1} parent=1 // pred_fallthru
      _
    // Predicated region
    $region54: #{tpu_custom_call.1} parent=1 // pred_check
      _
    $region55: #{tpu_custom_call.1} parent=1 // pred_check_branch
      %467 = sbr.rel (0) target = $region57
    $region56: #{tpu_custom_call.1} parent=1 // pred_region
      %s469 = ssub.s32 256, 256
      %470 = vsyncadd [#allocation9], %s469
      %s471 = sshll.u32 [#allocation12], 4
      %s472 = int_to_ptr.vmem [resolvable:$true] %s471
      %477 = dma.vmem_to_hbm [thread:$0]  %s472, 256, %s6, [#allocation9], 128, 128, 8
    $region57: #{tpu_custom_call.1} parent=1 // pred_fallthru
      _
    // Predicated region
    $region58: #{tpu_custom_call.1} parent=1 // pred_check
      _
    $region59: #{tpu_custom_call.1} parent=1 // pred_check_branch
      %479 = sbr.rel (0) target = $region61
    $region60: #{tpu_custom_call.1} parent=1 // pred_region
      %s481 = ssub.s32 128, 128
      %482 = vsyncadd [#allocation14], %s481
      %s483 = sshll.u32 [#allocation13], 4
      %s484 = int_to_ptr.vmem [resolvable:$true] %s483
      %489 = dma.vmem_to_hbm [thread:$0]  %s484, 128, %s7, [#allocation14], 64, 64, 4
    $region61: #{tpu_custom_call.1} parent=1 // pred_fallthru
      _
    // Predicated region
    $region62: #{tpu_custom_call.1} parent=1 // pred_check
      _
    $region63: #{tpu_custom_call.1} parent=1 // pred_check_branch
      %491 = sbr.rel (0) target = $region65
    $region64: #{tpu_custom_call.1} parent=1 // pred_region
      _
    $region65: #{tpu_custom_call.1} parent=1 // pred_fallthru
      _
    // Predicated region
    $region66: #{tpu_custom_call.1} parent=1 // pred_check
      _
    $region67: #{tpu_custom_call.1} parent=1 // pred_check_branch
      %493 = sbr.rel (0) target = $region69
    $region68: #{tpu_custom_call.1} parent=1 // pred_region
      %494 = dma.done [#allocation9], 256
    $region69: #{tpu_custom_call.1} parent=1 // pred_fallthru
      _
    // Predicated region
    $region70: #{tpu_custom_call.1} parent=1 // pred_check
      _
    $region71: #{tpu_custom_call.1} parent=1 // pred_check_branch
      %496 = sbr.rel (0) target = $region73
    $region72: #{tpu_custom_call.1} parent=1 // pred_region
      %497 = dma.done [#allocation14], 128
    $region73: #{tpu_custom_call.1} parent=1 // pred_fallthru
      _
    // Predicated region
    $region74: #{tpu_custom_call.1} parent=1 // pred_check
      _
    $region75: #{tpu_custom_call.1} parent=1 // pred_check_branch
      %499 = sbr.rel (0) target = $region77
    $region76: #{tpu_custom_call.1} parent=1 // pred_region
      _
    $region77: #{tpu_custom_call.1} parent=1 // pred_fallthru
      _
    %500 = vsyncpa [#allocation8], 1
    %501 = vsyncpa [#allocation11], 1
    %502 = vsyncpa [#allocation9], 1
    %503 = vsyncpa [#allocation14], 1

</llo_original>
